<compile_context>
chip_gen: v7x
topology: tpu7x:2x2x1
jax: 0.10.0
libtpu: 0.0.40
codegen_flags: <defaults>
</compile_context>

<pallas_src>
import jax
import jax.numpy as jnp
from jax.experimental import pallas as pl
from jax.experimental.pallas import tpu as pltpu

IN_FEATURES = 198
HIDDEN = 50
OUT_FEATURES = 1

DEFAULT_TILE_B = 8192     # v7x-safe f32 tile; also good for v5e/v6e
_MIN_SPLIT_ROWS = 512     # only force a >=2-step grid above this batch size


def _round_up(n, m):
    return ((n + m - 1) // m) * m


def _mlp_kernel(x_ref, w1_ref, b1_ref, w2_ref, b2_ref, o_ref):
    # Layer 1 on the MXU; f32 accumulation regardless of activation dtype.
    h = jnp.dot(x_ref[...], w1_ref[...], preferred_element_type=jnp.float32)
    # Bias + sigmoid in f32 (v5e has no bf16 VPU/EUP).
    h = jax.nn.sigmoid(h + b1_ref[...])                         # (tile_b, 50)
    # Layer 2 (50 -> 1) also on the MXU (w2 is a (50, 1) column). This avoids
    # the cross-lane XLU sum that would become the binding unit on v7x.
    y = jnp.dot(h, w2_ref[...], preferred_element_type=jnp.float32)
    o_ref[...] = jax.nn.sigmoid(y + b2_ref[...])                # (tile_b, 1)


def network_forward(x, w1, b1, w2, b2, *, tile_b=DEFAULT_TILE_B):
    """x: (B, 198); w1: (198, 50); b1: (1, 50); w2: (1, 50); b2: (1, 1).

    Returns (B, 1) f32 == sigmoid(sigmoid(x @ w1 + b1) @ w2.T + b2).
    x may be f32 or bf16; bf16-resident inputs halve the dominant HBM traffic.
    """
    B = x.shape[0]

    # Accept the caller's activation dtype; never cast x here (a wrapper-side
    # astype is an unfused extra pass over the whole activation in HBM).
    if x.dtype not in (jnp.bfloat16, jnp.float32):
        x = x.astype(jnp.float32)
    act_dtype = x.dtype

    # Tiny parameter relayouts (<=40 KiB total; negligible).
    w1 = w1.astype(act_dtype)                                   # (198, 50)
    b1 = b1.astype(jnp.float32).reshape(1, HIDDEN)              # (1, 50)
    w2_col = w2.astype(jnp.float32).reshape(HIDDEN, OUT_FEATURES)  # (50, 1)
    b2 = b2.astype(jnp.float32).reshape(1, OUT_FEATURES)        # (1, 1)

    # Tile selection: sublane-granule aligned, no larger than needed, and
    # (for large batches) split so the grid has >= 2 steps for megacore.
    granule = 16 if act_dtype == jnp.bfloat16 else 8
    b_eff = _round_up(B, granule)
    tile_b = max(granule, min(_round_up(tile_b, granule), b_eff))
    if b_eff >= _MIN_SPLIT_ROWS and pl.cdiv(b_eff, tile_b) < 2:
        tile_b = _round_up(pl.cdiv(b_eff, 2), granule)
    grid = (pl.cdiv(B, tile_b),)

    itemsize = jnp.dtype(act_dtype).itemsize
    cost = pl.CostEstimate(
        flops=2 * B * (IN_FEATURES * HIDDEN + HIDDEN * OUT_FEATURES),
        transcendentals=B * (HIDDEN + OUT_FEATURES),
        bytes_accessed=(B * IN_FEATURES * itemsize
                        + IN_FEATURES * HIDDEN * itemsize
                        + (HIDDEN + HIDDEN + OUT_FEATURES) * 4
                        + B * OUT_FEATURES * 4),
    )

    out = pl.pallas_call(
        _mlp_kernel,
        out_shape=jax.ShapeDtypeStruct((B, OUT_FEATURES), jnp.float32),
        grid=grid,
        in_specs=[
            pl.BlockSpec((tile_b, IN_FEATURES), lambda i: (i, 0)),    # streamed
            pl.BlockSpec((IN_FEATURES, HIDDEN), lambda i: (0, 0)),    # resident
            pl.BlockSpec((1, HIDDEN), lambda i: (0, 0)),              # resident
            pl.BlockSpec((HIDDEN, OUT_FEATURES), lambda i: (0, 0)),   # resident
            pl.BlockSpec((1, OUT_FEATURES), lambda i: (0, 0)),        # resident
        ],
        out_specs=pl.BlockSpec((tile_b, OUT_FEATURES), lambda i: (i, 0)),
        compiler_params=pltpu.CompilerParams(
            dimension_semantics=("parallel",),      # batch is independent
            vmem_limit_bytes=48 * 1024 * 1024,      # 8192-row f32 tile ~24 MiB
        ),
        cost_estimate=cost,
    )(x, w1, b1, w2_col, b2)

    return out


def init_params(key):
    """torch.nn.Linear-style init (U[-1/sqrt(fan_in), +1/sqrt(fan_in)]).
    Layer-1 weight is stored transposed, (in, out) = (198, 50), for a direct
    MXU dot; layer-2 weight keeps torch's native (out, in) = (1, 50) layout
    (the wrapper reshapes it to a (50, 1) column for the second matmul)."""
    k1, k2, k3, k4 = jax.random.split(key, 4)
    bound1 = 1.0 / jnp.sqrt(float(IN_FEATURES))
    bound2 = 1.0 / jnp.sqrt(float(HIDDEN))
    w1 = jax.random.uniform(k1, (IN_FEATURES, HIDDEN), jnp.float32, -bound1, bound1)
    b1 = jax.random.uniform(k2, (1, HIDDEN), jnp.float32, -bound1, bound1)
    w2 = jax.random.uniform(k3, (1, HIDDEN), jnp.float32, -bound2, bound2)
    b2 = jax.random.uniform(k4, (1, OUT_FEATURES), jnp.float32, -bound2, bound2)
    return w1, b1, w2, b2


def reference_forward(x, w1, b1, w2, b2):
    h = jax.nn.sigmoid(x.astype(jnp.float32) @ w1 + b1)
    return jax.nn.sigmoid(h @ w2.T + b2)


if __name__ == "__main__":
    key = jax.random.PRNGKey(0)
    kx, kp = jax.random.split(key)
    w1, b1, w2, b2 = init_params(kp)

    # Small single-tile case (tight tolerance, f32 path, tile clamped to B).
    B = 8
    x = jax.random.normal(kx, (B, IN_FEATURES), jnp.float32)
    out = jax.block_until_ready(network_forward(x, w1, b1, w2, b2))
    ref = reference_forward(x, w1, b1, w2, b2)
    assert out.shape == (B, OUT_FEATURES)
    assert jnp.allclose(out, ref, atol=1e-5, rtol=1e-5), "f32 mismatch (B=8)"

    # Multi-tile case with a ragged last block (exercises cdiv grid + masking).
    B2 = 300
    x2 = jax.random.normal(kx, (B2, IN_FEATURES), jnp.float32)
    out2 = jax.block_until_ready(network_forward(x2, w1, b1, w2, b2, tile_b=128))
    ref2 = reference_forward(x2, w1, b1, w2, b2)
    assert out2.shape == (B2, OUT_FEATURES)
    assert jnp.allclose(out2, ref2, atol=1e-5, rtol=1e-5), "f32 mismatch (B=300)"

    # bf16-resident inputs (caller-owned dtype; no wrapper cast of x inside).
    out_bf = jax.block_until_ready(
        network_forward(x2.astype(jnp.bfloat16), w1, b1, w2, b2, tile_b=128))
    assert jnp.allclose(out_bf, ref2, atol=2e-2), "bf16 path mismatch"

    # Larger ragged batch: exercises the "grid >= 2 for megacore" tile split.
    B3 = 600
    x3 = jax.random.normal(kx, (B3, IN_FEATURES), jnp.float32)
    out3 = jax.block_until_ready(network_forward(x3, w1, b1, w2, b2))
    ref3 = reference_forward(x3, w1, b1, w2, b2)
    assert out3.shape == (B3, OUT_FEATURES)
    assert jnp.allclose(out3, ref3, atol=1e-5, rtol=1e-5), "f32 mismatch (B=600)"

    print("KERNEL_OK")
</pallas_src>

<mosaic_0001>
module attributes {stable_mosaic.version = 11 : i64} {
  func.func @_mlp_kernel(%arg0: i32, %arg1: memref<8x198xf32, #tpu.memory_space<vmem>>, %arg2: memref<198x50xf32, #tpu.memory_space<vmem>>, %arg3: memref<1x50xf32, #tpu.memory_space<vmem>>, %arg4: memref<50x1xf32, #tpu.memory_space<vmem>>, %arg5: memref<1x1xf32, #tpu.memory_space<vmem>>, %arg6: memref<8x1xf32, #tpu.memory_space<vmem>>) attributes {dimension_semantics = [#tpu.dimension_semantics<parallel>], iteration_bounds = array<i64: 1>, scalar_prefetch = 0 : i64, scratch_operands = 0 : i64, tpu.core_type = #tpu.core_type<tc>, window_params = [{transform_indices = @transform_0, window_bounds = array<i64: 8, 198>}, {pipeline_mode = #tpu.pipeline_mode<synchronous>, transform_indices = @transform_1, window_bounds = array<i64: 198, 50>}, {pipeline_mode = #tpu.pipeline_mode<synchronous>, transform_indices = @transform_2, window_bounds = array<i64: 1, 50>}, {pipeline_mode = #tpu.pipeline_mode<synchronous>, transform_indices = @transform_3, window_bounds = array<i64: 50, 1>}, {pipeline_mode = #tpu.pipeline_mode<synchronous>, transform_indices = @transform_4, window_bounds = array<i64: 1, 1>}, {transform_indices = @transform_5, window_bounds = array<i64: 8, 1>}]} {
    %c0 = arith.constant 0 : index
    %c0_0 = arith.constant 0 : index
    %0 = vector.load %arg1[%c0, %c0_0] : memref<8x198xf32, #tpu.memory_space<vmem>>, vector<8x198xf32>
    %c0_1 = arith.constant 0 : index
    %c0_2 = arith.constant 0 : index
    %1 = vector.load %arg2[%c0_1, %c0_2] : memref<198x50xf32, #tpu.memory_space<vmem>>, vector<198x50xf32>
    %cst = arith.constant dense<0.000000e+00> : vector<8x50xf32>
    %2 = tpu.matmul %0, %1, %cst {dimension_numbers = #tpu.dot_dimension_numbers<[1], [0], [0], [1], [0, 0, 1, 1], [], []>} : vector<8x198xf32>, vector<198x50xf32>, vector<8x50xf32> -> vector<8x50xf32>
    %c0_3 = arith.constant 0 : index
    %c0_4 = arith.constant 0 : index
    %3 = vector.load %arg3[%c0_3, %c0_4] : memref<1x50xf32, #tpu.memory_space<vmem>>, vector<1x50xf32>
    %4 = vector.broadcast %3 : vector<1x50xf32> to vector<8x50xf32>
    %5 = arith.addf %2, %4 : vector<8x50xf32>
    %6 = arith.negf %5 : vector<8x50xf32>
    %7 = math.exp %6 : vector<8x50xf32>
    %cst_5 = arith.constant 1.000000e+00 : f32
    %8 = vector.broadcast %cst_5 : f32 to vector<8x50xf32>
    %9 = arith.addf %8, %7 : vector<8x50xf32>
    %10 = arith.divf %8, %9 : vector<8x50xf32>
    %c0_6 = arith.constant 0 : index
    %c0_7 = arith.constant 0 : index
    %11 = vector.load %arg4[%c0_6, %c0_7] : memref<50x1xf32, #tpu.memory_space<vmem>>, vector<50x1xf32>
    %cst_8 = arith.constant dense<0.000000e+00> : vector<8x1xf32>
    %12 = tpu.matmul %10, %11, %cst_8 {dimension_numbers = #tpu.dot_dimension_numbers<[1], [0], [0], [1], [0, 0, 1, 1], [], []>} : vector<8x50xf32>, vector<50x1xf32>, vector<8x1xf32> -> vector<8x1xf32>
    %c0_9 = arith.constant 0 : index
    %c0_10 = arith.constant 0 : index
    %13 = vector.load %arg5[%c0_9, %c0_10] : memref<1x1xf32, #tpu.memory_space<vmem>>, vector<1x1xf32>
    %14 = vector.broadcast %13 : vector<1x1xf32> to vector<8x1xf32>
    %15 = arith.addf %12, %14 : vector<8x1xf32>
    %16 = arith.negf %15 : vector<8x1xf32>
    %17 = math.exp %16 : vector<8x1xf32>
    %cst_11 = arith.constant 1.000000e+00 : f32
    %18 = vector.broadcast %cst_11 : f32 to vector<8x1xf32>
    %19 = arith.addf %18, %17 : vector<8x1xf32>
    %20 = arith.divf %18, %19 : vector<8x1xf32>
    %c0_12 = arith.constant 0 : index
    %c0_13 = arith.constant 0 : index
    %21 = vector.load %arg6[%c0_12, %c0_13] : memref<8x1xf32, #tpu.memory_space<vmem>>, vector<8x1xf32>
    tpu.vector_store %arg6[%c0_12, %c0_13], %20 {strides = array<i32>} : memref<8x1xf32, #tpu.memory_space<vmem>>, vector<8x1xf32>,
    return
  }
  func.func @transform_0(%arg0: i32) -> (i32, i32) {
    %c0_i32 = arith.constant 0 : i32
    %c0_i32_0 = arith.constant 0 : i32
    return %arg0, %c0_i32 : i32, i32
  }
  func.func @transform_1(%arg0: i32) -> (i32, i32) {
    %c0_i32 = arith.constant 0 : i32
    %c0_i32_0 = arith.constant 0 : i32
    %c0_i32_1 = arith.constant 0 : i32
    return %c0_i32, %c0_i32_0 : i32, i32
  }
  func.func @transform_2(%arg0: i32) -> (i32, i32) {
    %c0_i32 = arith.constant 0 : i32
    %c0_i32_0 = arith.constant 0 : i32
    %c0_i32_1 = arith.constant 0 : i32
    return %c0_i32, %c0_i32_0 : i32, i32
  }
  func.func @transform_3(%arg0: i32) -> (i32, i32) {
    %c0_i32 = arith.constant 0 : i32
    %c0_i32_0 = arith.constant 0 : i32
    %c0_i32_1 = arith.constant 0 : i32
    return %c0_i32, %c0_i32_0 : i32, i32
  }
  func.func @transform_4(%arg0: i32) -> (i32, i32) {
    %c0_i32 = arith.constant 0 : i32
    %c0_i32_0 = arith.constant 0 : i32
    %c0_i32_1 = arith.constant 0 : i32
    return %c0_i32, %c0_i32_0 : i32, i32
  }
  func.func @transform_5(%arg0: i32) -> (i32, i32) {
    %c0_i32 = arith.constant 0 : i32
    %c0_i32_0 = arith.constant 0 : i32
    return %arg0, %c0_i32 : i32, i32
  }
}

</mosaic_0001>

<llo_original>
// kernel: tpu_custom_call.1
$region0: #{tpu_custom_call.1}
  #allocation0 [shape = 'u32[]', space=smem, size = 0x4, offset = 0x4, fixed_abs, tag = 'smem constant byte address 0x4 - core index']
  #allocation1 [shape = 'u32[144,128]{1,0:T(1,128)}', space=vmem, size = 0x12000, scoped, tag = 'internal scratch']
  #allocation2 [shape = 'f32[1,1]{1,0:T(1,128)S(1)}', space=vmem, size = 0x200, scoped, tag = 'scoped memory for tpu_custom_call.1']
  %s0 = inlined_call_operand.vmem [shape: f32[8,198], index: 0, kind: input, shape index: {}]
  %s1 = inlined_call_operand.vmem [shape: f32[198,50], index: 1, kind: input, shape index: {}]
  %s2 = inlined_call_operand.vmem [shape: f32[1,50], index: 2, kind: input, shape index: {}]
  %s3 = inlined_call_operand.vmem [shape: f32[50,1], index: 3, kind: input, shape index: {}]
  %s4 = inlined_call_operand.<no memory space> [shape: f32[1,1], index: 4, kind: input, shape index: {}]
  %s5 = inlined_call_operand.vmem [shape: f32[8,1], index: 5, kind: output, shape index: {}]
  %s6 = sld [smem:[#allocation0]]
  $region30: #{tpu_custom_call.1} parent=0
    _
  %s8 = ssub.s32 1, %s6
  %s9 = scalar_select 0, %s8, %s6
  %v10 = vstv %s4
  %11 = vst [vmem:[#allocation2] sm:$0x1] %v10
  // Predicated region
  $region2: #{tpu_custom_call.1} parent=0 // pred_check
    _
  $region3: #{tpu_custom_call.1} parent=0 // pred_check_branch
    %13 = sbr.rel (0) target = $region5
  $region4: #{tpu_custom_call.1} parent=0 // pred_region
    _
  $region5: #{tpu_custom_call.1} parent=0 // pred_fallthru
    _
  // Predicated region
  $region6: #{tpu_custom_call.1} parent=0 // pred_check
    _
  $region7: #{tpu_custom_call.1} parent=0 // pred_check_branch
    %15 = sbr.rel (0) target = $region9
  $region8: #{tpu_custom_call.1} parent=0 // pred_region
    _
  $region9: #{tpu_custom_call.1} parent=0 // pred_fallthru
    _
  // Predicated region
  $region10: #{tpu_custom_call.1} parent=0 // pred_check
    _
  $region11: #{tpu_custom_call.1} parent=0 // pred_check_branch
    %17 = sbr.rel (0) target = $region13
  $region12: #{tpu_custom_call.1} parent=0 // pred_region
    _
  $region13: #{tpu_custom_call.1} parent=0 // pred_fallthru
    _
  // Predicated region
  $region14: #{tpu_custom_call.1} parent=0 // pred_check
    _
  $region15: #{tpu_custom_call.1} parent=0 // pred_check_branch
    %19 = sbr.rel (0) target = $region17
  $region16: #{tpu_custom_call.1} parent=0 // pred_region
    _
  $region17: #{tpu_custom_call.1} parent=0 // pred_fallthru
    _
  // Predicated region
  $region18: #{tpu_custom_call.1} parent=0 // pred_check
    _
  $region19: #{tpu_custom_call.1} parent=0 // pred_check_branch
    %21 = sbr.rel (0) target = $region21
  $region20: #{tpu_custom_call.1} parent=0 // pred_region
    _
  $region21: #{tpu_custom_call.1} parent=0 // pred_fallthru
    _
  %v22 = vld [vmem:[%s0] sm:$0xff]
  %v23 = vld [vmem:[%s0 + $0x8] sm:$0xff]
  %v24 = vld [vmem:[%s1] sm:$0xff]
  %v25 = vld [vmem:[%s1 + $0x8] sm:$0xff]
  %v26 = vld [vmem:[%s1 + $0x10] sm:$0xff]
  %v27 = vld [vmem:[%s1 + $0x18] sm:$0xff]
  %v28 = vld [vmem:[%s1 + $0x20] sm:$0xff]
  %v29 = vld [vmem:[%s1 + $0x28] sm:$0xff]
  %v30 = vld [vmem:[%s1 + $0x30] sm:$0xff]
  %v31 = vld [vmem:[%s1 + $0x38] sm:$0xff]
  %v32 = vld [vmem:[%s1 + $0x40] sm:$0xff]
  %v33 = vld [vmem:[%s1 + $0x48] sm:$0xff]
  %v34 = vld [vmem:[%s1 + $0x50] sm:$0xff]
  %v35 = vld [vmem:[%s1 + $0x58] sm:$0xff]
  %v36 = vld [vmem:[%s1 + $0x60] sm:$0xff]
  %v37 = vld [vmem:[%s1 + $0x68] sm:$0xff]
  %v38 = vld [vmem:[%s1 + $0x70] sm:$0xff]
  %v39 = vld [vmem:[%s1 + $0x78] sm:$0xff]
  %v40 = vld [vmem:[%s1 + $0x80] sm:$0xff]
  %v41 = vld [vmem:[%s1 + $0x88] sm:$0xff]
  %v42 = vld [vmem:[%s1 + $0x90] sm:$0xff]
  %v43 = vld [vmem:[%s1 + $0x98] sm:$0xff]
  %v44 = vld [vmem:[%s1 + $0xa0] sm:$0xff]
  %v45 = vld [vmem:[%s1 + $0xa8] sm:$0xff]
  %v46 = vld [vmem:[%s1 + $0xb0] sm:$0xff]
  %v47 = vld [vmem:[%s1 + $0xb8] sm:$0xff]
  %v48 = vld [vmem:[%s1 + $0xc0] sm:$0x3f]
  %v49 = vld [vmem:[%s2] sm:$0x1]
  %v51 = vlaneseq
  %v52 = vshrl.u32 %v51, 7
  %v53 = vsub.s32 0, %v52
  %v54 = vrot.slane %v49, %v53
  %vm56 = vcmask 572416
  %v58 = vsel %vm56, %v23, 0
  %vm60 = vcmask 1045504
  %v62 = vsel %vm60, %v48, 0
  %64 = vmatprep.subr.mxu0 0.0
  %65 = vmatpush1.msra.mxu0 %v24
  %66 = vmatprep.subr.mxu0 0.0
  %67 = vmatpush1.msra.mxu0 %v25
  %68 = vmatprep.subr.mxu0 0.0
  %69 = vmatpush1.msra.mxu0 %v26
  %70 = vmatprep.subr.mxu0 0.0
  %71 = vmatpush1.msra.mxu0 %v27
  %72 = vmatprep.subr.mxu0 0.0
  %73 = vmatpush1.msra.mxu0 %v28
  %74 = vmatprep.subr.mxu0 0.0
  %75 = vmatpush1.msra.mxu0 %v29
  %76 = vmatprep.subr.mxu0 0.0
  %77 = vmatpush1.msra.mxu0 %v30
  %78 = vmatprep.subr.mxu0 0.0
  %79 = vmatpush1.msra.mxu0 %v31
  %80 = vmatprep.subr.mxu0 0.0
  %81 = vmatpush1.msra.mxu0 %v32
  %82 = vmatprep.subr.mxu0 0.0
  %83 = vmatpush1.msra.mxu0 %v33
  %84 = vmatprep.subr.mxu0 0.0
  %85 = vmatpush1.msra.mxu0 %v34
  %86 = vmatprep.subr.mxu0 0.0
  %87 = vmatpush1.msra.mxu0 %v35
  %88 = vmatprep.subr.mxu0 0.0
  %89 = vmatpush1.msra.mxu0 %v36
  %90 = vmatprep.subr.mxu0 0.0
  %91 = vmatpush1.msra.mxu0 %v37
  %92 = vmatprep.subr.mxu0 0.0
  %93 = vmatpush1.msra.mxu0 %v38
  %94 = vmatprep.subr.mxu0 0.0
  %95 = vmatpush1.msra.mxu0 %v39
  %96 = vmatprep.subr.mxu0 0.0
  %97 = vmatpush1.msra.mxu0 %v40
  %98 = vmatprep.subr.mxu0 0.0
  %99 = vmatpush1.msra.mxu0 %v41
  %100 = vmatprep.subr.mxu0 0.0
  %101 = vmatpush1.msra.mxu0 %v42
  %102 = vmatprep.subr.mxu0 0.0
  %103 = vmatpush1.msra.mxu0 %v43
  %104 = vmatprep.subr.mxu0 0.0
  %105 = vmatpush1.msra.mxu0 %v44
  %106 = vmatprep.subr.mxu0 0.0
  %107 = vmatpush1.msra.mxu0 %v45
  %108 = vmatprep.subr.mxu0 0.0
  %109 = vmatpush1.msra.mxu0 %v46
  %110 = vmatprep.subr.mxu0 0.0
  %111 = vmatpush1.msra.mxu0 %v47
  %112 = vmatprep.subr.mxu0 0.0
  %113 = vmatpush1.msra.mxu0 %v62
  %114 = vmatprep.subr.mxu0 0.0
  %115 = vmatpush1.msra.mxu0 0.0
  %116 = vmatprep.subr.mxu0 0.0
  %117 = vmatpush1.msra.mxu0 0.0
  %118 = vmatprep.subr.mxu0 0.0
  %119 = vmatpush1.msra.mxu0 0.0
  %120 = vmatprep.subr.mxu0 0.0
  %121 = vmatpush1.msra.mxu0 0.0
  %122 = vmatprep.subr.mxu0 0.0
  %123 = vmatpush1.msra.mxu0 0.0
  %124 = vmatprep.subr.mxu0 0.0
  %125 = vmatpush1.msra.mxu0 0.0
  %126 = vmatprep.subr.mxu0 0.0
  %127 = vmatpush1.msra.mxu0 0.0
  %128 = vmatprep.mubr.f32.mxu0 %v58
  %129 = vmatmul.mubr.f32.gmra.mrb[0].mxu0 %v22
  %v130 = vpop.f32.mrb[0].mxu0
  %v131 = vadd.f32 %v54, %v130
  %v132 = vpop.f32.mrb[0].mxu0
  %133 = vdwg.mxu0
  %v134 = vxor.u32 %v131, 2147483648
  %v135 = vmul.f32 %v134, 1.442695
  %v136 = vpow.pop %v135
  %v137 = vadd.f32 %v136, 1.0
  %v138 = vrcp.pop %v137
  %v139 = vmul.f32 1.0, %v138
  %v140 = vld [vmem:[%s3] sm:$0xff]
  %v141 = vld [vmem:[%s3 + $0x8] sm:$0xff]
  %v142 = vld [vmem:[%s3 + $0x10] sm:$0xff]
  %v143 = vld [vmem:[%s3 + $0x18] sm:$0xff]
  %v144 = vld [vmem:[%s3 + $0x20] sm:$0xff]
  %v145 = vld [vmem:[%s3 + $0x28] sm:$0xff]
  %v146 = vld [vmem:[%s3 + $0x30] sm:$0x3]
  %v147 = vld [vmem:[#allocation2] sm:$0x1]
  %v149 = vlaneseq
  %v150 = vshrl.u32 %v149, 7
  %v151 = vsub.s32 0, %v150
  %v152 = vrot.slane %v147, %v151
  %vm154 = vcmask 408576
  %v156 = vsel %vm154, %v139, 0
  %vm158 = vcmask 1041408
  %v160 = vsel %vm158, %v146, 0
  %162 = vmatprep.subr.mxu0 0.0
  %163 = vmatpush1.msra.mxu0 %v140
  %164 = vmatprep.subr.mxu0 0.0
  %165 = vmatpush1.msra.mxu0 %v141
  %166 = vmatprep.subr.mxu0 0.0
  %167 = vmatpush1.msra.mxu0 %v142
  %168 = vmatprep.subr.mxu0 0.0
  %169 = vmatpush1.msra.mxu0 %v143
  %170 = vmatprep.subr.mxu0 0.0
  %171 = vmatpush1.msra.mxu0 %v144
  %172 = vmatprep.subr.mxu0 0.0
  %173 = vmatpush1.msra.mxu0 %v145
  %174 = vmatprep.subr.mxu0 0.0
  %175 = vmatpush1.msra.mxu0 %v160
  %176 = vmatprep.subr.mxu0 0.0
  %177 = vmatpush1.msra.mxu0 0.0
  %178 = vmatprep.subr.mxu0 0.0
  %179 = vmatpush1.msra.mxu0 0.0
  %180 = vmatprep.subr.mxu0 0.0
  %181 = vmatpush1.msra.mxu0 0.0
  %182 = vmatprep.subr.mxu0 0.0
  %183 = vmatpush1.msra.mxu0 0.0
  %184 = vmatprep.subr.mxu0 0.0
  %185 = vmatpush1.msra.mxu0 0.0
  %186 = vmatprep.subr.mxu0 0.0
  %187 = vmatpush1.msra.mxu0 0.0
  %188 = vmatprep.subr.mxu0 0.0
  %189 = vmatpush1.msra.mxu0 0.0
  %190 = vmatprep.subr.mxu0 0.0
  %191 = vmatpush1.msra.mxu0 0.0
  %192 = vmatprep.subr.mxu0 0.0
  %193 = vmatpush1.msra.mxu0 0.0
  %194 = vmatprep.subr.mxu0 0.0
  %195 = vmatpush1.msra.mxu0 0.0
  %196 = vmatprep.subr.mxu0 0.0
  %197 = vmatpush1.msra.mxu0 0.0
  %198 = vmatprep.subr.mxu0 0.0
  %199 = vmatpush1.msra.mxu0 0.0
  %200 = vmatprep.subr.mxu0 0.0
  %201 = vmatpush1.msra.mxu0 0.0
  %202 = vmatprep.subr.mxu0 0.0
  %203 = vmatpush1.msra.mxu0 0.0
  %204 = vmatprep.subr.mxu0 0.0
  %205 = vmatpush1.msra.mxu0 0.0
  %206 = vmatprep.subr.mxu0 0.0
  %207 = vmatpush1.msra.mxu0 0.0
  %208 = vmatprep.subr.mxu0 0.0
  %209 = vmatpush1.msra.mxu0 0.0
  %210 = vmatprep.subr.mxu0 0.0
  %211 = vmatpush1.msra.mxu0 0.0
  %212 = vmatprep.subr.mxu0 0.0
  %213 = vmatpush1.msra.mxu0 0.0
  %214 = vmatprep.subr.mxu0 0.0
  %215 = vmatpush1.msra.mxu0 0.0
  %216 = vmatprep.subr.mxu0 0.0
  %217 = vmatpush1.msra.mxu0 0.0
  %218 = vmatprep.subr.mxu0 0.0
  %219 = vmatpush1.msra.mxu0 0.0
  %220 = vmatprep.subr.mxu0 0.0
  %221 = vmatpush1.msra.mxu0 0.0
  %222 = vmatprep.subr.mxu0 0.0
  %223 = vmatpush1.msra.mxu0 0.0
  %224 = vmatprep.subr.mxu0 0.0
  %225 = vmatpush1.msra.mxu0 0.0
  %226 = vmatprep.mubr.f32.mxu0 0.0
  %227 = vmatmul.mubr.f32.gmra.mrb[0].mxu0 %v156
  %v228 = vpop.f32.mrb[0].mxu0
  %v229 = vadd.f32 %v152, %v228
  %v230 = vpop.f32.mrb[0].mxu0
  %231 = vdwg.mxu0
  %v232 = vxor.u32 %v229, 2147483648
  %v233 = vmul.f32 %v232, 1.442695
  %v234 = vpow.pop %v233
  %v235 = vadd.f32 %v234, 1.0
  %v236 = vrcp.pop %v235
  %v237 = vmul.f32 1.0, %v236
  %vm238 = vcmask 7168
  %239 = vst.msk [vmem:[%s5] sm:$0xff] %vm238, %v237
  // Predicated region
  $region22: #{tpu_custom_call.1} parent=0 // pred_check
    _
  $region23: #{tpu_custom_call.1} parent=0 // pred_check_branch
    %241 = sbr.rel (0) target = $region25
  $region24: #{tpu_custom_call.1} parent=0 // pred_region
    _
  $region25: #{tpu_custom_call.1} parent=0 // pred_fallthru
    _
  // Predicated region
  $region26: #{tpu_custom_call.1} parent=0 // pred_check
    _
  $region27: #{tpu_custom_call.1} parent=0 // pred_check_branch
    %243 = sbr.rel (0) target = $region29
  $region28: #{tpu_custom_call.1} parent=0 // pred_region
    _
  $region29: #{tpu_custom_call.1} parent=0 // pred_fallthru
    _

</llo_original>
